<compile_context>
chip_gen: v7x
topology: tpu7x:2x2x1
jax: 0.10.0
libtpu: 0.0.40
codegen_flags: <defaults>
</compile_context>

<pallas_src>
import functools

import jax
import jax.numpy as jnp
from jax.experimental import pallas as pl
from jax.experimental.pallas import tpu as pltpu


# ---------------------------------------------------------------------------
# Tiling / VMEM sizing
# ---------------------------------------------------------------------------

def _vmem_budget_and_target():
    """Per-generation scoped-VMEM budget and per-block byte target."""
    default_phys = 64 * 1024 * 1024          # conservative fallback (v7x-sized)
    try:
        info = pltpu.get_tpu_info()
        phys = int(getattr(info, "vmem_capacity_bytes", default_phys))
    except Exception:                         # interpret mode / non-TPU tracing
        phys = default_phys
    # Leave headroom for compiler-internal scratch: <= 5/8 of physical, and
    # never more than 64 MiB (v5e/v6e have 128 MiB, v7x only 64 MiB).
    budget = min(64 * 1024 * 1024, (phys * 5) // 8)
    # ~4 MiB blocks where VMEM is plentiful, ~2 MiB on v7x.
    target = 4 * 1024 * 1024 if phys >= 96 * 1024 * 1024 else 2 * 1024 * 1024
    return budget, target


def _pick_tiles(B, D, itemsize, vmem_budget, target_block_bytes):
    """Pick (row_tile, col_tile) so each block is ~target_block_bytes and the
    whole double-buffered pipeline (plus f32 intermediates) fits the budget."""
    # Live VMEM per block element: double-buffered x + y blocks (4 * itemsize)
    # plus ~3 whole-tile f32 intermediates (upcast x + transcendental temps).
    per_elem_vmem = 4 * itemsize + 3 * 4

    # Column (feature) tile: keep full rows unless even a minimal 8-row block
    # would exceed the byte target (very large D) -> tile D as well.
    if 8 * D * itemsize <= target_block_bytes or D <= 128:
        td = D
    else:
        td = (target_block_bytes // (8 * itemsize) // 128) * 128
        td = max(128, min(td, (D // 128) * 128))
        if td >= D:
            td = D

    # Row (batch) tile: fill toward the byte target, capped by the VMEM budget.
    tb = min(
        B,
        max(8, target_block_bytes // (td * itemsize)),
        max(8, vmem_budget // (td * per_elem_vmem)),
    )
    if tb < B:
        tb = max(8, (tb // 8) * 8)            # keep (8, 128) block tiling legal
    return tb, td


# ---------------------------------------------------------------------------
# Kernel
# ---------------------------------------------------------------------------

def _logit_kernel(x_ref, y_ref, ld_ref, *, mode, B, D, tb, td,
                  mask_rows, mask_cols):
    j = pl.program_id(1)
    x = x_ref[...].astype(jnp.float32)

    valid = None
    if mask_rows:
        i = pl.program_id(0)
        rows = jax.lax.broadcasted_iota(jnp.int32, (tb, td), 0)
        valid = (i * tb + rows) < B
    if mask_cols:
        cols = jax.lax.broadcasted_iota(jnp.int32, (tb, td), 1)
        vc = (j * td + cols) < D
        valid = vc if valid is None else jnp.logical_and(valid, vc)

    if mode == "direct":
        # y = log(x) - log1p(-x);  ld_elem = -(log(x) + log1p(-x))
        if valid is not None:
            x = jnp.where(valid, x, 0.5)      # keep padded lanes finite (no NaN)
        lx = jnp.log(x)
        l1mx = jnp.log1p(-x)                  # well-conditioned log(1 - x)
        y = lx - l1mx
        ld_elem = -(lx + l1mx)                # reuse the two logs
    else:
        # y = sigmoid(x);  ld_elem = -x - 2*softplus(-x) = -|x| - 2*log1p(e)
        # Single shared e = exp(-|x|) feeds both outputs (stable for all x).
        if valid is not None:
            x = jnp.where(valid, x, 0.0)
        ax = jnp.abs(x)
        e = jnp.exp(-ax)                      # 1 EUP exp per element
        l1pe = jnp.log1p(e)                   # 1 EUP log per element
        num = jnp.where(x >= 0, 1.0, e)
        y = num / (1.0 + e)                   # exact sigmoid
        ld_elem = -ax - 2.0 * l1pe

    y_ref[...] = y.astype(y_ref.dtype)

    if valid is not None:
        ld_elem = jnp.where(valid, ld_elem, 0.0)   # padded lanes contribute 0

    partial = jnp.sum(ld_elem, axis=-1, keepdims=True)   # (tb, 1) f32

    # logdet output block is resident across the (arbitrary) column axis:
    # init on the first column block, then accumulate in f32.
    @pl.when(j == 0)
    def _():
        ld_ref[...] = jnp.zeros_like(ld_ref)

    ld_ref[...] += partial


# ---------------------------------------------------------------------------
# Wrapper
# ---------------------------------------------------------------------------

def logit_forward(x, cond_inputs=None, mode="direct", _force_tiles=None):
    """Pallas port of Logit.forward. Returns (outputs, logdet) with
    outputs.shape == x.shape (x.dtype) and logdet.shape == (B, 1) in float32."""
    assert x.ndim == 2, "kernel expects (B, D); flatten leading dims outside"
    B, D = x.shape
    itemsize = jnp.dtype(x.dtype).itemsize

    budget, target = _vmem_budget_and_target()
    if _force_tiles is not None:              # test hook: exercise grid/masking
        tb, td = _force_tiles
    else:
        tb, td = _pick_tiles(B, D, itemsize, budget, target)

    grid = (pl.cdiv(B, tb), pl.cdiv(D, td))
    kernel = functools.partial(
        _logit_kernel, mode=mode, B=B, D=D, tb=tb, td=td,
        mask_rows=(B % tb != 0), mask_cols=(D % td != 0))

    cost = pl.CostEstimate(
        flops=6 * B * D,
        transcendentals=2 * B * D,
        bytes_accessed=2 * B * D * itemsize + 4 * B,
    )

    y, ld = pl.pallas_call(
        kernel,
        out_shape=(
            jax.ShapeDtypeStruct((B, D), x.dtype),
            jax.ShapeDtypeStruct((B, 1), jnp.float32),   # logdet always f32
        ),
        grid=grid,
        in_specs=[pl.BlockSpec((tb, td), lambda i, j: (i, j))],
        out_specs=(
            pl.BlockSpec((tb, td), lambda i, j: (i, j)),
            pl.BlockSpec((tb, 1), lambda i, j: (i, 0)),
        ),
        compiler_params=pltpu.CompilerParams(
            # rows independent -> parallel (megacore); cols are a reduction
            # for logdet -> arbitrary, and placed last in the grid.
            dimension_semantics=("parallel", "arbitrary"),
            vmem_limit_bytes=budget,
        ),
        cost_estimate=cost,
    )(x)
    return y, ld


# ---------------------------------------------------------------------------
# Reference + checks
# ---------------------------------------------------------------------------

def _logit_forward_ref(x, mode="direct"):
    x = x.astype(jnp.float32)
    if mode == "direct":
        y = jnp.log(x) - jnp.log1p(-x)
        ld = (-jnp.log(x) - jnp.log1p(-x)).sum(-1, keepdims=True)
    else:
        y = jax.nn.sigmoid(x)
        ld = (-x - 2.0 * jnp.logaddexp(0.0, -x)).sum(-1, keepdims=True)
    return y, ld


def _check(x, mode, force_tiles=None):
    y, ld = logit_forward(x, mode=mode, _force_tiles=force_tiles)
    jax.block_until_ready((y, ld))
    yr, ldr = _logit_forward_ref(x, mode=mode)
    assert y.shape == x.shape and ld.shape == (x.shape[0], 1)
    assert ld.dtype == jnp.float32
    assert jnp.allclose(y, yr, atol=1e-5, rtol=1e-5), f"y mismatch ({mode})"
    assert jnp.allclose(ld, ldr, atol=1e-4, rtol=1e-5), f"logdet mismatch ({mode})"


if __name__ == "__main__":
    key = jax.random.PRNGKey(0)
    k1, k2, k3, k4 = jax.random.split(key, 4)

    # Small single-block case (B=8, hidden=32).
    # direct mode expects inputs in (0, 1); inverse mode takes reals.
    x_unit = jax.random.uniform(k1, (8, 32), dtype=jnp.float32,
                                minval=0.05, maxval=0.95)
    x_real = jax.random.normal(k2, (8, 32), dtype=jnp.float32)
    _check(x_unit, "direct")
    _check(x_real, "inverse")

    # Gridded case with forced small tiles: exercises the 2-D (parallel,
    # arbitrary) grid, the logdet accumulation across column blocks, and the
    # partial edge-block masking (40 % 16 != 0, 200 % 128 != 0) at small shapes.
    x_unit_g = jax.random.uniform(k3, (40, 200), dtype=jnp.float32,
                                  minval=0.05, maxval=0.95)
    x_real_g = jax.random.normal(k4, (40, 200), dtype=jnp.float32)
    _check(x_unit_g, "direct", force_tiles=(16, 128))
    _check(x_real_g, "inverse", force_tiles=(16, 128))

    print("KERNEL_OK")
</pallas_src>

<mosaic_0001>
module attributes {stable_mosaic.version = 11 : i64} {
  func.func @_logit_kernel(%arg0: i32, %arg1: i32, %arg2: memref<8x32xf32, #tpu.memory_space<vmem>>, %arg3: memref<8x32xf32, #tpu.memory_space<vmem>>, %arg4: memref<8x1xf32, #tpu.memory_space<vmem>>) attributes {dimension_semantics = [#tpu.dimension_semantics<parallel>, #tpu.dimension_semantics<arbitrary>], iteration_bounds = array<i64: 1, 1>, scalar_prefetch = 0 : i64, scratch_operands = 0 : i64, tpu.core_type = #tpu.core_type<tc>, window_params = [{transform_indices = @transform_0, window_bounds = array<i64: 8, 32>}, {transform_indices = @transform_1, window_bounds = array<i64: 8, 32>}, {transform_indices = @transform_2, window_bounds = array<i64: 8, 1>}]} {
    %c0 = arith.constant 0 : index
    %c0_0 = arith.constant 0 : index
    %0 = vector.load %arg2[%c0, %c0_0] : memref<8x32xf32, #tpu.memory_space<vmem>>, vector<8x32xf32>
    %1 = math.log %0 : vector<8x32xf32>
    %cst = arith.constant 0.000000e+00 : f32
    %2 = vector.broadcast %cst : f32 to vector<8x32xf32>
    %3 = arith.subf %2, %0 : vector<8x32xf32>
    %4 = math.log1p %3 : vector<8x32xf32>
    %5 = arith.subf %1, %4 : vector<8x32xf32>
    %6 = arith.addf %1, %4 : vector<8x32xf32>
    %cst_1 = arith.constant 0.000000e+00 : f32
    %7 = vector.broadcast %cst_1 : f32 to vector<8x32xf32>
    %8 = arith.subf %7, %6 : vector<8x32xf32>
    %c0_2 = arith.constant 0 : index
    %c0_3 = arith.constant 0 : index
    %9 = vector.load %arg3[%c0_2, %c0_3] : memref<8x32xf32, #tpu.memory_space<vmem>>, vector<8x32xf32>
    tpu.vector_store %arg3[%c0_2, %c0_3], %5 {strides = array<i32>} : memref<8x32xf32, #tpu.memory_space<vmem>>, vector<8x32xf32>,
    %cst_4 = arith.constant dense<0.000000e+00> : vector<8xf32>
    %10 = vector.multi_reduction <add>, %8, %cst_4 [1] : vector<8x32xf32> to vector<8xf32>
    %11 = vector.shape_cast %10 : vector<8xf32> to vector<8x1xf32>
    %c0_i32 = arith.constant 0 : i32
    %12 = arith.cmpi eq, %arg1, %c0_i32 : i32
    %13 = arith.extui %12 : i1 to i32
    %c0_i32_5 = arith.constant 0 : i32
    %14 = arith.cmpi ne, %13, %c0_i32_5 : i32
    scf.if %14 {
      %cst_10 = arith.constant 0.000000e+00 : f32
      %18 = vector.broadcast %cst_10 : f32 to vector<8x1xf32>
      %c0_11 = arith.constant 0 : index
      %c0_12 = arith.constant 0 : index
      %19 = vector.load %arg4[%c0_11, %c0_12] : memref<8x1xf32, #tpu.memory_space<vmem>>, vector<8x1xf32>
      tpu.vector_store %arg4[%c0_11, %c0_12], %18 {strides = array<i32>} : memref<8x1xf32, #tpu.memory_space<vmem>>, vector<8x1xf32>,
    } else {
    }
    %c0_6 = arith.constant 0 : index
    %c0_7 = arith.constant 0 : index
    %15 = vector.load %arg4[%c0_6, %c0_7] : memref<8x1xf32, #tpu.memory_space<vmem>>, vector<8x1xf32>
    %16 = arith.addf %15, %11 : vector<8x1xf32>
    %c0_8 = arith.constant 0 : index
    %c0_9 = arith.constant 0 : index
    %17 = vector.load %arg4[%c0_8, %c0_9] : memref<8x1xf32, #tpu.memory_space<vmem>>, vector<8x1xf32>
    tpu.vector_store %arg4[%c0_8, %c0_9], %16 {strides = array<i32>} : memref<8x1xf32, #tpu.memory_space<vmem>>, vector<8x1xf32>,
    return
  }
  func.func @transform_0(%arg0: i32, %arg1: i32) -> (i32, i32) {
    %c0_i32 = arith.constant 0 : i32
    return %arg0, %arg1 : i32, i32
  }
  func.func @transform_1(%arg0: i32, %arg1: i32) -> (i32, i32) {
    %c0_i32 = arith.constant 0 : i32
    return %arg0, %arg1 : i32, i32
  }
  func.func @transform_2(%arg0: i32, %arg1: i32) -> (i32, i32) {
    %c0_i32 = arith.constant 0 : i32
    %c0_i32_0 = arith.constant 0 : i32
    return %arg0, %c0_i32 : i32, i32
  }
}

</mosaic_0001>

<llo_original>
// kernel: tpu_custom_call.1
$region0: #{tpu_custom_call.1}
  #allocation0 [shape = 'u32[]', space=smem, size = 0x4, offset = 0x4, fixed_abs, tag = 'smem constant byte address 0x4 - core index']
  #allocation1 [shape = 'u32[144,128]{1,0:T(1,128)}', space=vmem, size = 0x12000, scoped, tag = 'internal scratch']
  %s0 = inlined_call_operand.hbm [shape: f32[8,32], index: 0, kind: input, shape index: {}]
  %s1 = inlined_call_operand.hbm [shape: f32[8,32], index: 1, kind: output, shape index: {0}]
  %s2 = inlined_call_operand.vmem [shape: f32[8,1], index: 2, kind: output, shape index: {1}]
  %3 = xla_tuple %s1, %s2
  %s4 = sld [smem:[#allocation0]]
  $region30: #{tpu_custom_call.1} parent=0
    _
  %s6 = ssub.s32 1, %s4
  %s7 = scalar_select 0, %s6, %s4
  $region1: #{tpu_custom_call.1} parent=0
    #allocation2 [shape = 'u8[4096]{0}', space=vmem, size = 0x1000, scoped, tag = 'input window, operand 0, single buffered']
    #allocation3 [shape = 's32[1]{0}', space=sflag, size = 0x4, scoped, tag = 'scoped memory for tpu_custom_call.1']
    #allocation4 [shape = 's32[1]{0}', space=sflag, size = 0x4, scoped, tag = 'scoped memory for tpu_custom_call.1']
    #allocation5 [shape = 'u8[4096]{0}', space=vmem, size = 0x1000, scoped, tag = 'output window, operand 0, single buffered']
    %8 = vsyncpa [#allocation3], 0
    %9 = vsyncpa [#allocation4], 0
    // Predicated region
    $region2: #{tpu_custom_call.1} parent=1 // pred_check
      _
    $region3: #{tpu_custom_call.1} parent=1 // pred_check_branch
      %11 = sbr.rel (0) target = $region5
    $region4: #{tpu_custom_call.1} parent=1 // pred_region
      %s13 = ssub.s32 128, 128
      %14 = vsyncadd [#allocation3], %s13
      %s16 = sshll.u32 [#allocation2], 4
      %s17 = int_to_ptr.vmem [resolvable:$true] %s16
      %19 = dma.hbm_to_vmem [thread:$0]  %s0, 128, %s17, [#allocation3]
    $region5: #{tpu_custom_call.1} parent=1 // pred_fallthru
      _
    // Predicated region
    $region6: #{tpu_custom_call.1} parent=1 // pred_check
      _
    $region7: #{tpu_custom_call.1} parent=1 // pred_check_branch
      %21 = sbr.rel (0) target = $region9
    $region8: #{tpu_custom_call.1} parent=1 // pred_region
      %22 = dma.done [#allocation3], 128
    $region9: #{tpu_custom_call.1} parent=1 // pred_fallthru
      _
    %v23 = vld [vmem:[#allocation2] sm:$0xff]
    %v24 = vlog2.pop %v23
    %v25 = vmul.f32 %v24, 0.6931472
    %v26 = vsub.f32 0.0, %v23
    %v27 = vadd.f32 %v26, 1.0
    %v28 = vlog2.pop %v27
    %v29 = vmul.f32 %v28, 0.6931472
    %v30 = vmul.f32 -0.5, %v26
    %v31 = vadd.f32 %v30, 1.0
    %v32 = vmul.f32 %v31, %v26
    %v33 = vand.u32 2147483647, %v26
    %vm34 = vcmp.lt.f32.partialorder %v33, 0.0004427343
    %v35 = vsel %vm34, %v32, %v29
    %v36 = vsub.f32 %v25, %v35
    %v37 = vadd.f32 %v25, %v35
    %v38 = vsub.f32 0.0, %v37
    %vm39 = vcmask 261120
    %40 = vst.msk [vmem:[#allocation5] sm:$0xff] %vm39, %v36
    %v41 = vsel %vm39, %v38, 0.0
    %42 = vadd.xlane.f32.xlu0 %v41
    %v43 = vpop.xlane.xlu0 %42
    %p44 = scmp.eq.s32.totalorder 0, 0
    // Predicated region
    $region10: #{tpu_custom_call.1} parent=1 // pred_check
      %p45 = pneg %p44
    $region11: #{tpu_custom_call.1} parent=1 // pred_check_branch
      %47 = sbr.rel (%p45) target = $region13
    $region12: #{tpu_custom_call.1} parent=1 // pred_region
      %vm48 = vcmask 7168
      %49 = vst.msk [vmem:[%s2] sm:$0xff] %vm48, 0.0
    $region13: #{tpu_custom_call.1} parent=1 // pred_fallthru
      _
    %v50 = vld [vmem:[%s2] sm:$0xff]
    %v51 = vadd.f32 %v50, %v43
    %vm52 = vcmask 7168
    %53 = vst.msk [vmem:[%s2] sm:$0xff] %vm52, %v51
    // Predicated region
    $region14: #{tpu_custom_call.1} parent=1 // pred_check
      _
    $region15: #{tpu_custom_call.1} parent=1 // pred_check_branch
      %55 = sbr.rel (0) target = $region17
    $region16: #{tpu_custom_call.1} parent=1 // pred_region
      %s57 = ssub.s32 128, 128
      %58 = vsyncadd [#allocation4], %s57
      %s60 = sshll.u32 [#allocation5], 4
      %s61 = int_to_ptr.vmem [resolvable:$true] %s60
      %63 = dma.vmem_to_hbm [thread:$0]  %s61, 128, %s1, [#allocation4]
    $region17: #{tpu_custom_call.1} parent=1 // pred_fallthru
      _
    // Predicated region
    $region18: #{tpu_custom_call.1} parent=1 // pred_check
      _
    $region19: #{tpu_custom_call.1} parent=1 // pred_check_branch
      %65 = sbr.rel (0) target = $region21
    $region20: #{tpu_custom_call.1} parent=1 // pred_region
      _
    $region21: #{tpu_custom_call.1} parent=1 // pred_fallthru
      _
    // Predicated region
    $region22: #{tpu_custom_call.1} parent=1 // pred_check
      _
    $region23: #{tpu_custom_call.1} parent=1 // pred_check_branch
      %67 = sbr.rel (0) target = $region25
    $region24: #{tpu_custom_call.1} parent=1 // pred_region
      %68 = dma.done [#allocation4], 128
    $region25: #{tpu_custom_call.1} parent=1 // pred_fallthru
      _
    // Predicated region
    $region26: #{tpu_custom_call.1} parent=1 // pred_check
      _
    $region27: #{tpu_custom_call.1} parent=1 // pred_check_branch
      %70 = sbr.rel (0) target = $region29
    $region28: #{tpu_custom_call.1} parent=1 // pred_region
      _
    $region29: #{tpu_custom_call.1} parent=1 // pred_fallthru
      _
    %71 = vsyncpa [#allocation3], 1
    %72 = vsyncpa [#allocation4], 1

</llo_original>
